<compile_context>
chip_gen: v5e
topology: v5e:2x2
jax: 0.10.0
libtpu: 0.0.40
codegen_flags: <defaults>
</compile_context>

<pallas_src>
import functools

import jax
import jax.numpy as jnp
from jax.experimental import pallas as pl
from jax.experimental.pallas import tpu as pltpu

_LANE = 128


def _device_kind():
    try:
        return jax.devices()[0].device_kind.lower()
    except Exception:  # no TPU visible at trace time
        return ""


def _num_tensorcores():
    # v7x has 2 TensorCores per chip, each with its own path to HBM, so a
    # 2-way leading split is worth ~2x on this memory-bound kernel. v5e/v6e
    # have a single TC: an explicit size-2 axis there is just a serial loop.
    return 2 if "v7" in _device_kind() else 1


def _vmem_budget_bytes():
    # Physical VMEM per TensorCore: 64 MiB on v7x, 128 MiB on v5e/v6e.
    # Keep the whole pipeline (blocks + compiler temporaries) well below that.
    return (48 if "v7" in _device_kind() else 64) * 1024 * 1024


def _auto_tile_n(C, itemsize, vmem_budget):
    """Row-tile sizing: aim for ~1 MiB logits blocks (near the HBM-roofline
    knee of the measured tile-size curve) while the double-buffered blocks plus
    the compiler's large f32 intermediates stay inside the generation budget.
    Returns (tile_n, per_row_bytes_estimate)."""
    cp = max(_LANE, ((C + _LANE - 1) // _LANE) * _LANE)   # lane-padded classes
    per_row = (2 * cp * itemsize          # double-buffered logits block
               + 2 * _LANE * 4            # double-buffered (tile_n,1) i32 target
               + 6 * cp * 4               # big f32/i32 temps (x, z, exp, col, ...)
               + 8 * _LANE * 4)           # (tile_n,1) column temps (m, lse, ...)
    tile_from_block = (1 * 1024 * 1024) // (cp * itemsize)
    tile_from_budget = int(vmem_budget * 0.6) // per_row
    tile_n = min(tile_from_block, tile_from_budget, 8192)
    tile_n = max(16, (tile_n // 16) * 16)   # sublane multiple for f32 and bf16
    return tile_n, per_row


def _ls_ce_kernel(logits_ref, tgt_ref, out_ref, *,
                  ignore_index, n_rows, tile_n, tiles_per_core):
    c = pl.program_id(0)          # per-TensorCore split ("parallel")
    i = pl.program_id(1)          # row-tile reduction axis ("arbitrary", last)

    @pl.when(i == 0)
    def _init():
        out_ref[0, 0] = jnp.float32(0.0)
        out_ref[0, 1] = jnp.float32(0.0)

    # Global first row of this (unclamped) tile. Fully-out-of-range tiles --
    # possible on the clamped tail of the per-core split -- skip the body.
    row0 = (c * tiles_per_core + i) * tile_n

    @pl.when(row0 < n_rows)
    def _body():
        x = logits_ref[...].astype(jnp.float32)        # (tile_n, C), f32 math
        t = tgt_ref[...]                               # (tile_n, 1) int32
        C = x.shape[-1]

        rows = row0 + jax.lax.broadcasted_iota(jnp.int32, (tile_n, 1), 0)
        row_ok = rows < n_rows                         # tail-row mask

        # Numerically stable log-sum-exp; log_softmax is never materialized.
        m = jnp.max(x, axis=-1, keepdims=True)
        z = x - m
        lse = jnp.log(jnp.sum(jnp.exp(z), axis=-1, keepdims=True))   # (tile_n,1)
        sum_z = jnp.sum(z, axis=-1, keepdims=True)                   # (tile_n,1)

        # Smoothing term per row: -sum_j log_softmax(x)_j = C*lse - sum_j z_j.
        # Rows with target == ignore_index are intentionally INCLUDED here
        # (matches the PyTorch module); only the nll term excludes them.
        smooth_row = float(C) * lse - sum_z

        # NLL term: pick z[row, target] with a one-hot compare (no TPU gather).
        col = jax.lax.broadcasted_iota(jnp.int32, (tile_n, C), 1)
        picked_z = jnp.sum(jnp.where(col == t, z, 0.0), axis=-1, keepdims=True)
        valid = row_ok & (t != ignore_index)

        # Collapse the tile to two scalars (XLU reduce) and accumulate them in
        # the resident SMEM output row: no lane-padded VMEM scratch columns and
        # no vst traffic on the accumulator path.
        out_ref[0, 0] += jnp.sum(jnp.where(row_ok, smooth_row, 0.0))
        out_ref[0, 1] += jnp.sum(jnp.where(valid, lse - picked_z, 0.0))


def label_smoothing_cross_entropy(logits, target, *, eps=0.1,
                                  reduction="mean", ignore_index=-100,
                                  tile_n=None, num_cores=None):
    """JAX/Pallas equivalent of LabelSmoothingCrossEntropy.forward.

    logits: (N, C) float32 or bfloat16. Feeding bf16 is preferred when the
    producer allows it: the kernel is HBM-bound and upcasts to f32 in-vreg, so
    bf16 halves the only large memory stream (~2x wall-clock, largest on v5e).
    target: (N,) integer class ids; ignore_index rows allowed.
    tile_n=None / num_cores=None auto-size per dtype, C and TPU generation.
    """
    N, C = logits.shape
    itemsize = jnp.dtype(logits.dtype).itemsize
    vmem_budget = _vmem_budget_bytes()

    auto_tile, per_row = _auto_tile_n(C, itemsize, vmem_budget)
    if tile_n is None:
        tile_n = auto_tile
    else:
        assert tile_n > 0 and tile_n % 8 == 0, \
            "tile_n must be a positive multiple of 8 (16 preferred for bf16)"
    # A block equal to the full dim is always legal; tail rows are masked
    # in-kernel, so the caller never pads and arbitrary N works.
    tile_n = min(tile_n, N)

    tiles_total = pl.cdiv(N, tile_n)
    if num_cores is None:
        num_cores = _num_tensorcores()
    num_cores = max(1, min(num_cores, tiles_total))   # leading "parallel" axis
    tiles_per_core = pl.cdiv(tiles_total, num_cores)
    last_block = tiles_total - 1

    # Scoped-VMEM limit derived from the actual buffer-size estimate, clamped
    # to the per-generation budget (v7x physical VMEM is only 64 MiB/TC).
    est_bytes = tile_n * per_row
    vmem_limit = int(min(vmem_budget, max(32 * 1024 * 1024, 2 * est_bytes)))

    tgt2d = target.astype(jnp.int32).reshape(N, 1)

    kernel = functools.partial(
        _ls_ce_kernel, ignore_index=ignore_index, n_rows=N,
        tile_n=tile_n, tiles_per_core=tiles_per_core)

    def row_block(c, i):
        # Clamp so fully-out-of-range tiles of the per-core split re-read the
        # last real block; the kernel skips their compute entirely.
        return (jnp.minimum(c * tiles_per_core + i, last_block), 0)

    cost = pl.CostEstimate(
        flops=8 * N * C,
        transcendentals=N * C + N,          # exp per element + log per row
        bytes_accessed=N * C * itemsize + N * 4 + num_cores * 2 * 4,
    )

    sums = pl.pallas_call(
        kernel,
        out_shape=jax.ShapeDtypeStruct((num_cores, 2), jnp.float32),
        grid_spec=pltpu.PrefetchScalarGridSpec(
            num_scalar_prefetch=0,
            grid=(num_cores, tiles_per_core),
            in_specs=[
                # TODO(synk): for vocab-scale C add a C-tiling grid axis with an
                # online log-sum-exp instead of loading a full (tile_n, C) row.
                # If profiling shows exposed DMA on the many-small-steps path,
                # sweep pipeline_mode=pl.Buffered(3) on this logits BlockSpec.
                pl.BlockSpec((tile_n, C), row_block),
                # Target stays sublane-major (N,1): a (1,N) lane-major block
                # would need an in-kernel cross-lane transpose for the one-hot.
                pl.BlockSpec((tile_n, 1), row_block),
            ],
            out_specs=pl.BlockSpec(
                (1, 2), lambda c, i: (c, 0),
                memory_space=pltpu.MemorySpace.SMEM),
        ),
        compiler_params=pltpu.CompilerParams(
            # TODO(synk): on v7x, verify with a profile that the leading
            # "parallel" axis really lands on both TensorCores; if one TC sits
            # idle, switch it to pltpu.CORE_PARALLEL (or pl.core_map over
            # pltpu.create_tensorcore_mesh) with exact per-core tile counts.
            dimension_semantics=("parallel", "arbitrary"),
            vmem_limit_bytes=vmem_limit,
        ),
        cost_estimate=cost,
    )(logits, tgt2d)

    smooth_sum = jnp.sum(sums[:, 0])
    nll_sum = jnp.sum(sums[:, 1])
    # Valid-row count is a cheap exact O(N) integer reduction; keeping it out
    # of the kernel saves a lane-padded scratch column and its vst traffic.
    valid_cnt = jnp.sum((target != ignore_index).astype(jnp.float32))

    if reduction == "sum":
        smooth_loss = smooth_sum
        nll_loss = nll_sum
    elif reduction == "mean":
        smooth_loss = smooth_sum / N
        # NOTE: divides by zero (-> NaN) when every target is ignore_index,
        # matching PyTorch's behavior.
        nll_loss = nll_sum / valid_cnt
    else:
        # TODO(synk): reduction='none' (per-row loss vector) not implemented.
        raise NotImplementedError(reduction)

    return smooth_loss * eps / C + (1.0 - eps) * nll_loss


def _reference(logits, target, *, eps=0.1, reduction="mean", ignore_index=-100):
    """Pure-JAX reference mirroring the PyTorch module."""
    N, C = logits.shape
    logp = jax.nn.log_softmax(logits.astype(jnp.float32), axis=-1)
    valid = target != ignore_index
    safe_t = jnp.where(valid, target, 0)
    picked = jnp.take_along_axis(logp, safe_t[:, None], axis=-1)[:, 0]
    if reduction == "sum":
        smooth = -logp.sum()
        nll = -(jnp.where(valid, picked, 0.0).sum())
    else:  # mean
        smooth = (-logp.sum(axis=-1)).mean()
        nll = -(jnp.where(valid, picked, 0.0).sum()) / valid.sum()
    return smooth * eps / C + (1.0 - eps) * nll


if __name__ == "__main__":
    key = jax.random.PRNGKey(0)

    # 1) NER-like small shape: (batch*seq, num_labels) = (16, 32), float32,
    #    auto tile / auto core count.
    batch, seq, num_labels = 2, 8, 32
    N, C = batch * seq, num_labels
    k1, k2, k3 = jax.random.split(key, 3)
    logits = jax.random.normal(k1, (N, C), dtype=jnp.float32)
    target = jax.random.randint(k2, (N,), 0, C, dtype=jnp.int32)
    target = target.at[3].set(-100).at[10].set(-100)     # "padding" tokens

    loss = jax.block_until_ready(label_smoothing_cross_entropy(logits, target))
    ref = _reference(logits, target)
    assert jnp.allclose(loss, ref, rtol=1e-5, atol=1e-5), (loss, ref)

    loss_s = jax.block_until_ready(
        label_smoothing_cross_entropy(logits, target, reduction="sum"))
    ref_s = _reference(logits, target, reduction="sum")
    assert jnp.allclose(loss_s, ref_s, rtol=1e-5, atol=1e-4), (loss_s, ref_s)

    # 2) Ragged N (not a tile multiple), auto tile, f32.
    N2, C2 = 300, 21
    l2 = jax.random.normal(k3, (N2, C2), dtype=jnp.float32)
    t2 = jax.random.randint(jax.random.PRNGKey(7), (N2,), 0, C2, dtype=jnp.int32)
    t2 = jnp.where(jnp.arange(N2) % 17 == 0, -100, t2)

    loss2 = jax.block_until_ready(label_smoothing_cross_entropy(l2, t2))
    ref2 = _reference(l2, t2)
    assert jnp.allclose(loss2, ref2, rtol=1e-5, atol=1e-5), (loss2, ref2)

    # 3) Forced 2-way core split + small explicit tile: exercises the multi-tile
    #    grid, the tail-row mask, and the clamped-tile skip path on any chip.
    loss3 = jax.block_until_ready(
        label_smoothing_cross_entropy(l2, t2, tile_n=128, num_cores=2))
    assert jnp.allclose(loss3, ref2, rtol=1e-5, atol=1e-5), (loss3, ref2)

    # 4) bf16 logits (preferred HBM-halving path), auto tile.
    l2_bf16 = l2.astype(jnp.bfloat16)
    loss4 = jax.block_until_ready(label_smoothing_cross_entropy(l2_bf16, t2))
    ref4 = _reference(l2_bf16, t2)
    assert jnp.allclose(loss4, ref4, rtol=1e-4, atol=1e-4), (loss4, ref4)

    print("KERNEL_OK")
</pallas_src>

<mosaic_0001>
module attributes {stable_mosaic.version = 11 : i64} {
  func.func @_ls_ce_kernel(%arg0: i32, %arg1: i32, %arg2: memref<16x32xf32, #tpu.memory_space<vmem>>, %arg3: memref<16x1xi32, #tpu.memory_space<vmem>>, %arg4: memref<1x2xf32, #tpu.memory_space<smem>>) attributes {dimension_semantics = [#tpu.dimension_semantics<parallel>, #tpu.dimension_semantics<arbitrary>], iteration_bounds = array<i64: 1, 1>, scalar_prefetch = 0 : i64, scratch_operands = 0 : i64, tpu.core_type = #tpu.core_type<tc>, window_params = [{transform_indices = @transform_0, window_bounds = array<i64: 16, 32>}, {transform_indices = @transform_1, window_bounds = array<i64: 16, 1>}, {transform_indices = @transform_2, window_bounds = array<i64: 1, 2>}]} {
    %c0_i32 = arith.constant 0 : i32
    %0 = arith.cmpi eq, %arg1, %c0_i32 : i32
    %1 = arith.extui %0 : i1 to i32
    %c0_i32_0 = arith.constant 0 : i32
    %2 = arith.cmpi ne, %1, %c0_i32_0 : i32
    scf.if %2 {
      %cst = arith.constant 0.000000e+00 : f32
      %c0 = arith.constant 0 : index
      %c0_3 = arith.constant 0 : index
      %9 = memref.load %arg4[%c0, %c0_3] : memref<1x2xf32, #tpu.memory_space<smem>>
      memref.store %cst, %arg4[%c0, %c0_3] : memref<1x2xf32, #tpu.memory_space<smem>>
      %cst_4 = arith.constant 0.000000e+00 : f32
      %c0_5 = arith.constant 0 : index
      %c1 = arith.constant 1 : index
      %10 = memref.load %arg4[%c0_5, %c1] : memref<1x2xf32, #tpu.memory_space<smem>>
      memref.store %cst_4, %arg4[%c0_5, %c1] : memref<1x2xf32, #tpu.memory_space<smem>>
    } else {
    }
    %c1_i32 = arith.constant 1 : i32
    %3 = arith.muli %arg0, %c1_i32 : i32
    %4 = arith.addi %3, %arg1 : i32
    %c16_i32 = arith.constant 16 : i32
    %5 = arith.muli %4, %c16_i32 : i32
    %c16_i32_1 = arith.constant 16 : i32
    %6 = arith.cmpi slt, %5, %c16_i32_1 : i32
    %7 = arith.extui %6 : i1 to i32
    %c0_i32_2 = arith.constant 0 : i32
    %8 = arith.cmpi ne, %7, %c0_i32_2 : i32
    scf.if %8 {
      %c0 = arith.constant 0 : index
      %c0_3 = arith.constant 0 : index
      %9 = vector.load %arg2[%c0, %c0_3] : memref<16x32xf32, #tpu.memory_space<vmem>>, vector<16x32xf32>
      %c0_4 = arith.constant 0 : index
      %c0_5 = arith.constant 0 : index
      %10 = vector.load %arg3[%c0_4, %c0_5] : memref<16x1xi32, #tpu.memory_space<vmem>>, vector<16x1xi32>
      %11 = tpu.iota {dimensions = array<i32: 0>} : vector<16x1xi32>
      %12 = vector.broadcast %5 : i32 to vector<16x1xi32>
      %13 = arith.addi %12, %11 : vector<16x1xi32>
      %c16_i32_6 = arith.constant 16 : i32
      %14 = vector.broadcast %c16_i32_6 : i32 to vector<16x1xi32>
      %15 = arith.cmpi slt, %13, %14 : vector<16x1xi32>
      %cst = arith.constant dense<0xFF800000> : vector<16xf32>
      %16 = vector.multi_reduction <maximumf>, %9, %cst [1] : vector<16x32xf32> to vector<16xf32>
      %17 = vector.shape_cast %16 : vector<16xf32> to vector<16x1xf32>
      %18 = vector.broadcast %17 : vector<16x1xf32> to vector<16x32xf32>
      %19 = arith.subf %9, %18 : vector<16x32xf32>
      %20 = math.exp %19 : vector<16x32xf32>
      %cst_7 = arith.constant dense<0.000000e+00> : vector<16xf32>
      %21 = vector.multi_reduction <add>, %20, %cst_7 [1] : vector<16x32xf32> to vector<16xf32>
      %22 = vector.shape_cast %21 : vector<16xf32> to vector<16x1xf32>
      %23 = math.log %22 : vector<16x1xf32>
      %cst_8 = arith.constant dense<0.000000e+00> : vector<16xf32>
      %24 = vector.multi_reduction <add>, %19, %cst_8 [1] : vector<16x32xf32> to vector<16xf32>
      %25 = vector.shape_cast %24 : vector<16xf32> to vector<16x1xf32>
      %cst_9 = arith.constant 3.200000e+01 : f32
      %26 = vector.broadcast %cst_9 : f32 to vector<16x1xf32>
      %27 = arith.mulf %26, %23 : vector<16x1xf32>
      %28 = arith.subf %27, %25 : vector<16x1xf32>
      %29 = tpu.iota {dimensions = array<i32: 1>} : vector<16x32xi32>
      %30 = vector.broadcast %10 : vector<16x1xi32> to vector<16x32xi32>
      %31 = arith.cmpi eq, %29, %30 : vector<16x32xi32>
      %cst_10 = arith.constant 0.000000e+00 : f32
      %32 = vector.broadcast %cst_10 : f32 to vector<16x32xf32>
      %33 = arith.select %31, %19, %32 : vector<16x32xi1>, vector<16x32xf32>
      %cst_11 = arith.constant dense<0.000000e+00> : vector<16xf32>
      %34 = vector.multi_reduction <add>, %33, %cst_11 [1] : vector<16x32xf32> to vector<16xf32>
      %35 = vector.shape_cast %34 : vector<16xf32> to vector<16x1xf32>
      %c-100_i32 = arith.constant -100 : i32
      %36 = vector.broadcast %c-100_i32 : i32 to vector<16x1xi32>
      %37 = arith.cmpi ne, %10, %36 : vector<16x1xi32>
      %38 = arith.andi %15, %37 : vector<16x1xi1>
      %c0_12 = arith.constant 0 : index
      %c0_13 = arith.constant 0 : index
      %39 = memref.load %arg4[%c0_12, %c0_13] : memref<1x2xf32, #tpu.memory_space<smem>>
      %cst_14 = arith.constant 0.000000e+00 : f32
      %40 = vector.broadcast %cst_14 : f32 to vector<16x1xf32>
      %41 = arith.select %15, %28, %40 : vector<16x1xi1>, vector<16x1xf32>
      %42 = vector.shape_cast %41 : vector<16x1xf32> to vector<1x16x1xf32>
      %cst_15 = arith.constant dense<0.000000e+00> : vector<1xf32>
      %43 = vector.multi_reduction <add>, %42, %cst_15 [1, 2] : vector<1x16x1xf32> to vector<1xf32>
      %44 = vector.shape_cast %43 : vector<1xf32> to vector<1x1x1xf32>
      %45 = vector.extract %44[0, 0, 0] : f32 from vector<1x1x1xf32>
      %46 = arith.addf %39, %45 : f32
      %c0_16 = arith.constant 0 : index
      %c0_17 = arith.constant 0 : index
      %47 = memref.load %arg4[%c0_16, %c0_17] : memref<1x2xf32, #tpu.memory_space<smem>>
      memref.store %46, %arg4[%c0_16, %c0_17] : memref<1x2xf32, #tpu.memory_space<smem>>
      %c0_18 = arith.constant 0 : index
      %c1 = arith.constant 1 : index
      %48 = memref.load %arg4[%c0_18, %c1] : memref<1x2xf32, #tpu.memory_space<smem>>
      %49 = arith.subf %23, %35 : vector<16x1xf32>
      %cst_19 = arith.constant 0.000000e+00 : f32
      %50 = vector.broadcast %cst_19 : f32 to vector<16x1xf32>
      %51 = arith.select %38, %49, %50 : vector<16x1xi1>, vector<16x1xf32>
      %52 = vector.shape_cast %51 : vector<16x1xf32> to vector<1x16x1xf32>
      %cst_20 = arith.constant dense<0.000000e+00> : vector<1xf32>
      %53 = vector.multi_reduction <add>, %52, %cst_20 [1, 2] : vector<1x16x1xf32> to vector<1xf32>
      %54 = vector.shape_cast %53 : vector<1xf32> to vector<1x1x1xf32>
      %55 = vector.extract %54[0, 0, 0] : f32 from vector<1x1x1xf32>
      %56 = arith.addf %48, %55 : f32
      %c0_21 = arith.constant 0 : index
      %c1_22 = arith.constant 1 : index
      %57 = memref.load %arg4[%c0_21, %c1_22] : memref<1x2xf32, #tpu.memory_space<smem>>
      memref.store %56, %arg4[%c0_21, %c1_22] : memref<1x2xf32, #tpu.memory_space<smem>>
    } else {
    }
    return
  }
  func.func @transform_0(%arg0: i32, %arg1: i32) -> (i32, i32) {
    %c1_i32 = arith.constant 1 : i32
    %0 = arith.muli %arg0, %c1_i32 : i32
    %1 = arith.addi %0, %arg1 : i32
    %c0_i32 = arith.constant 0 : i32
    %2 = arith.minsi %1, %c0_i32 : i32
    %c0_i32_0 = arith.constant 0 : i32
    %c0_i32_1 = arith.constant 0 : i32
    return %2, %c0_i32_0 : i32, i32
  }
  func.func @transform_1(%arg0: i32, %arg1: i32) -> (i32, i32) {
    %c1_i32 = arith.constant 1 : i32
    %0 = arith.muli %arg0, %c1_i32 : i32
    %1 = arith.addi %0, %arg1 : i32
    %c0_i32 = arith.constant 0 : i32
    %2 = arith.minsi %1, %c0_i32 : i32
    %c0_i32_0 = arith.constant 0 : i32
    %c0_i32_1 = arith.constant 0 : i32
    return %2, %c0_i32_0 : i32, i32
  }
  func.func @transform_2(%arg0: i32, %arg1: i32) -> (i32, i32) {
    %c0_i32 = arith.constant 0 : i32
    %c0_i32_0 = arith.constant 0 : i32
    return %arg0, %c0_i32 : i32, i32
  }
}

</mosaic_0001>

<llo_original>
// kernel: tpu_custom_call.1
$region0: #{tpu_custom_call.1}
  #allocation0 [shape = 'u32[]', space=smem, size = 0x4, offset = 0x4, fixed_abs, tag = 'smem constant byte address 0x4 - core index']
  #allocation1 [shape = 'u32[72,128]{1,0:T(1,128)}', space=vmem, size = 0x9000, scoped, tag = 'internal scratch']
  %s0 = inlined_call_operand.vmem [shape: f32[16,32], index: 0, kind: input, shape index: {}]
  %s1 = inlined_call_operand.vmem [shape: s32[16,1], index: 1, kind: input, shape index: {}]
  %s2 = inlined_call_operand.hbm [shape: f32[1,2], index: 2, kind: output, shape index: {}]
  %s3 = sld [smem:[#allocation0]]
  $region26: #{tpu_custom_call.1} parent=0
    _
  %s5 = ssub.s32 1, %s3
  %s6 = scalar_select 0, %s5, %s3
  $region1: #{tpu_custom_call.1} parent=0
    #allocation2 [shape = 'u8[512]{0}', space=smem, size = 0x200, scoped, tag = 'output window, operand 0, single buffered']
    #allocation3 [shape = 's32[1]{0}', space=sflag, size = 0x4, scoped, tag = 'scoped memory for tpu_custom_call.1']
    %7 = vsyncpa [#allocation3], 0
    // Predicated region
    $region2: #{tpu_custom_call.1} parent=1 // pred_check
      _
    $region3: #{tpu_custom_call.1} parent=1 // pred_check_branch
      %9 = sbr.rel (0) target = $region5
    $region4: #{tpu_custom_call.1} parent=1 // pred_region
      %s10 = sadd.s32 0, 0
      %p11 = scmp.lt.s32.totalorder %s10, 0
      %s12 = scalar_select %p11, %s10, 0
      %s13 = smul.u32 2, %s12
      %p14 = scmp.lt.s32.totalorder %s13, 1
      %s15 = scalar_select %p14, %s13, 1
      %s16 = smul.addr %s15, 8
      %s17 = scalar_lea.vmem %s0, %s16
      %s18 = sadd.s32 0, 0
      %p19 = scmp.lt.s32.totalorder %s18, 0
      %s20 = scalar_select %p19, %s18, 0
      %s21 = smul.u32 2, %s20
    $region5: #{tpu_custom_call.1} parent=1 // pred_fallthru
      _
    // Predicated region
    $region6: #{tpu_custom_call.1} parent=1 // pred_check
      _
    $region7: #{tpu_custom_call.1} parent=1 // pred_check_branch
      %23 = sbr.rel (0) target = $region9
    $region8: #{tpu_custom_call.1} parent=1 // pred_region
      %s24 = sadd.s32 0, 0
      %p25 = scmp.lt.s32.totalorder %s24, 0
      %s26 = scalar_select %p25, %s24, 0
      %s27 = smul.u32 2, %s26
      %p28 = scmp.lt.s32.totalorder %s27, 1
      %s29 = scalar_select %p28, %s27, 1
      %s30 = smul.addr %s29, 8
      %s31 = scalar_lea.vmem %s1, %s30
      %s32 = sadd.s32 0, 0
      %p33 = scmp.lt.s32.totalorder %s32, 0
      %s34 = scalar_select %p33, %s32, 0
      %s35 = smul.u32 2, %s34
    $region9: #{tpu_custom_call.1} parent=1 // pred_fallthru
      _
    %s36 = sadd.s32 0, 0
    %p37 = scmp.lt.s32.totalorder %s36, 0
    %s38 = scalar_select %p37, %s36, 0
    %s39 = smul.u32 2, %s38
    %p40 = scmp.lt.s32.totalorder %s39, 1
    %s41 = scalar_select %p40, %s39, 1
    %s42 = smul.addr %s41, 8
    %s43 = scalar_lea.vmem %s0, %s42
    %s44 = sadd.s32 0, 0
    %p45 = scmp.lt.s32.totalorder %s44, 0
    %s46 = scalar_select %p45, %s44, 0
    %s47 = smul.u32 2, %s46
    %p48 = scmp.lt.s32.totalorder %s47, 1
    %s49 = scalar_select %p48, %s47, 1
    %s50 = smul.addr %s49, 8
    %s51 = scalar_lea.vmem %s1, %s50
    %s52 = sadd.s32 0, 0
    %p53 = scmp.lt.s32.totalorder %s52, 0
    %s54 = scalar_select %p53, %s52, 0
    %s55 = smul.u32 2, %s54
    %p56 = scmp.lt.s32.totalorder %s55, 1
    %s57 = scalar_select %p56, %s55, 1
    %s58 = smul.addr %s57, 8
    %s59 = scalar_lea.vmem %s0, %s58
    %s60 = sadd.s32 0, 0
    %p61 = scmp.lt.s32.totalorder %s60, 0
    %s62 = scalar_select %p61, %s60, 0
    %s63 = smul.u32 2, %s62
    %s64 = sadd.s32 0, 0
    %p65 = scmp.lt.s32.totalorder %s64, 0
    %s66 = scalar_select %p65, %s64, 0
    %s67 = smul.u32 2, %s66
    %p68 = scmp.lt.s32.totalorder %s67, 1
    %s69 = scalar_select %p68, %s67, 1
    %s70 = smul.addr %s69, 8
    %s71 = scalar_lea.vmem %s1, %s70
    %s72 = sadd.s32 0, 0
    %p73 = scmp.lt.s32.totalorder %s72, 0
    %s74 = scalar_select %p73, %s72, 0
    %s75 = smul.u32 2, %s74
    %p76 = scmp.eq.s32.totalorder 0, 0
    // Predicated region
    $region10: #{tpu_custom_call.1} parent=1 // pred_check
      %p77 = pneg %p76
    $region11: #{tpu_custom_call.1} parent=1 // pred_check_branch
      %79 = sbr.rel (%p77) target = $region13
    $region12: #{tpu_custom_call.1} parent=1 // pred_region
      %s80 = scalar_lea.smem [#allocation2], 0
      %81 = sst [smem:[%s80]] 0.0
      %s82 = scalar_lea.smem [#allocation2], 1
      %83 = sst [smem:[%s82]] 0.0
    $region13: #{tpu_custom_call.1} parent=1 // pred_fallthru
      _
    %s84 = sadd.s32 0, 0
    %s85 = smul.u32 %s84, 16
    %p86 = scmp.lt.s32.totalorder %s85, 16
    // Predicated region
    $region14: #{tpu_custom_call.1} parent=1 // pred_check
      %p87 = pneg %p86
    $region15: #{tpu_custom_call.1} parent=1 // pred_check_branch
      %89 = sbr.rel (%p87) target = $region17
    $region16: #{tpu_custom_call.1} parent=1 // pred_region
      %v90 = vld [vmem:[%s59] sm:$0xff]
      %v91 = vld [vmem:[%s59 + $0x8] sm:$0xff]
      %v92 = vld [vmem:[%s71] sm:$0xff]
      %v93 = vld [vmem:[%s71 + $0x8] sm:$0xff]
      %v94 = vlaneseq
      %v95 = vshrl.u32 %v94, 7
      %v96 = vadd.s32 %v95, 8
      %v97 = vstv %s85
      %v98 = vadd.s32 %v97, %v95
      %v99 = vadd.s32 %v97, %v96
      %vm100 = vcmp.lt.s32.totalorder %v98, 16
      %vm101 = vcmp.lt.s32.totalorder %v99, 16
      %vm102 = vcmask 261120
      %v103 = vsel %vm102, %v90, -inf
      %104 = vmax.xlane.f32.xlu0 %v103
      %v105 = vpop.xlane.xlu0 %104
      %v106 = vsel %vm102, %v91, -inf
      %107 = vmax.xlane.f32.xlu0 %v106
      %v108 = vpop.xlane.xlu0 %107
      %v109 = vsub.f32 %v90, %v105
      %v110 = vsub.f32 %v91, %v108
      %v111 = vmul.f32 %v109, 1.442695
      %v112 = vpow.pop %v111
      %v113 = vmul.f32 %v110, 1.442695
      %v114 = vpow.pop %v113
      %v115 = vsel %vm102, %v112, 0.0
      %116 = vadd.xlane.f32.xlu0 %v115
      %v117 = vpop.xlane.xlu0 %116
      %v118 = vsel %vm102, %v114, 0.0
      %119 = vadd.xlane.f32.xlu0 %v118
      %v120 = vpop.xlane.xlu0 %119
      %v121 = vlog2.pop %v117
      %v122 = vmul.f32 %v121, 0.6931472
      %v123 = vlog2.pop %v120
      %v124 = vmul.f32 %v123, 0.6931472
      %v125 = vsel %vm102, %v109, 0.0
      %126 = vadd.xlane.f32.xlu0 %v125
      %v127 = vpop.xlane.xlu0 %126
      %v128 = vsel %vm102, %v110, 0.0
      %129 = vadd.xlane.f32.xlu0 %v128
      %v130 = vpop.xlane.xlu0 %129
      %v131 = vmul.f32 %v122, 32.0
      %v132 = vmul.f32 %v124, 32.0
      %v133 = vsub.f32 %v131, %v127
      %v134 = vsub.f32 %v132, %v130
      %v135 = vlaneseq
      %v136 = vand.u32 %v135, 127
      %137 = vset.pattern.permute.xlu0 0
      %138 = vperm.xlu0 %137, %v92
      %v139 = vpop.permute.xlu0 %138
      %140 = vset.pattern.permute.xlu0 0
      %141 = vperm.xlu0 %140, %v93
      %v142 = vpop.permute.xlu0 %141
      %vm143 = vcmp.eq.s32.totalorder %v136, %v139
      %vm144 = vcmp.eq.s32.totalorder %v136, %v142
      %v145 = vsel %vm143, %v109, 0.0
      %v146 = vsel %vm144, %v110, 0.0
      %v147 = vsel %vm102, %v145, 0.0
      %148 = vadd.xlane.f32.xlu0 %v147
      %v149 = vpop.xlane.xlu0 %148
      %v150 = vsel %vm102, %v146, 0.0
      %151 = vadd.xlane.f32.xlu0 %v150
      %v152 = vpop.xlane.xlu0 %151
      %vm153 = vcmp.ne.s32.totalorder %v92, 4294967196
      %vm154 = vcmp.ne.s32.totalorder %v93, 4294967196
      %vm155 = vmand %vm100, %vm153
      %vm156 = vmand %vm101, %vm154
      %s157 = sld [smem:[#allocation2]]
      %v158 = vsel %vm100, %v133, 0.0
      %v159 = vsel %vm101, %v134, 0.0
      %vm160 = vcmask 7168
      %v161 = vsel %vm160, %v158, 0.0
      %v162 = vsel %vm160, %v159, 0.0
      %v163 = vadd.f32 %v161, %v162
      %164 = vadd.xlane.f32.xlu0 %v163
      %v165 = vpop.xlane.xlu0 %164
      %v166 = vrot.slane %v165, 4
      %v167 = vadd.f32 %v165, %v166
      %v168 = vrot.slane %v167, 2
      %v169 = vadd.f32 %v167, %v168
      %v170 = vrot.slane %v169, 1
      %v171 = vadd.f32 %v169, %v170
      %s172 = vtos %v171
      %s173 = sadd.f32 %s157, %s172
      %s174 = scalar_lea.smem [#allocation2], 0
      %175 = sst [smem:[%s174]] %s173
      %s176 = sld [smem:[#allocation2 + $0x1]]
      %v177 = vsub.f32 %v122, %v149
      %v178 = vsub.f32 %v124, %v152
      %v179 = vsel %vm155, %v177, 0.0
      %v180 = vsel %vm156, %v178, 0.0
      %v181 = vsel %vm160, %v179, 0.0
      %v182 = vsel %vm160, %v180, 0.0
      %v183 = vadd.f32 %v181, %v182
      %184 = vadd.xlane.f32.xlu0 %v183
      %v185 = vpop.xlane.xlu0 %184
      %v186 = vrot.slane %v185, 4
      %v187 = vadd.f32 %v185, %v186
      %v188 = vrot.slane %v187, 2
      %v189 = vadd.f32 %v187, %v188
      %v190 = vrot.slane %v189, 1
      %v191 = vadd.f32 %v189, %v190
      %s192 = vtos %v191
      %s193 = sadd.f32 %s176, %s192
      %s194 = scalar_lea.smem [#allocation2], 1
      %195 = sst [smem:[%s194]] %s193
    $region17: #{tpu_custom_call.1} parent=1 // pred_fallthru
      _
    // Predicated region
    $region18: #{tpu_custom_call.1} parent=1 // pred_check
      _
    $region19: #{tpu_custom_call.1} parent=1 // pred_check_branch
      %197 = sbr.rel (0) target = $region21
    $region20: #{tpu_custom_call.1} parent=1 // pred_region
      %199 = vsyncadd [#allocation3], 0
      %s201 = sshll.u32 %s2, 4
      %s202 = int_to_ptr.hbm [resolvable:$true] %s201
      %204 = dma.smem_to_hbm [#allocation2], 16, %s202, [#allocation3]
    $region21: #{tpu_custom_call.1} parent=1 // pred_fallthru
      _
    // Predicated region
    $region22: #{tpu_custom_call.1} parent=1 // pred_check
      _
    $region23: #{tpu_custom_call.1} parent=1 // pred_check_branch
      %206 = sbr.rel (0) target = $region25
    $region24: #{tpu_custom_call.1} parent=1 // pred_region
      %208 = dma.done [#allocation3], 16
    $region25: #{tpu_custom_call.1} parent=1 // pred_fallthru
      _
    %209 = sfence
    %210 = vsyncpa [#allocation3], 1

</llo_original>
